<compile_context>
chip_gen: v7x
topology: tpu7x:2x2x1
jax: 0.10.0
libtpu: 0.0.40
codegen_flags: <defaults>
</compile_context>

<pallas_src>
import functools

import jax
import jax.numpy as jnp
from jax.experimental import pallas as pl
from jax.experimental.pallas import tpu as pltpu


# ------------------------------- helpers --------------------------------------
def _round_up(n: int, m: int) -> int:
    return ((n + m - 1) // m) * m


# ----------------------------- Pallas kernel ----------------------------------
def _mlp_fused_kernel(*refs, n_linear: int):
    """refs = (x, w0, b0, w1, b1, ..., w_head, b_head, out).

    x:   bf16 (TM, d_in)          -- real (unpadded) feature width
    w_l: bf16 (d_prev_pad, d_pad) -- output dims padded to 128 lanes
    b_l: f32  (1, d_pad)
    The whole MLP runs on the (TM, *) tile; intermediates never leave VMEM/vregs.
    """
    x_ref = refs[0]
    o_ref = refs[1 + 2 * n_linear]

    h = x_ref[...]                                         # bf16 MXU operand
    for l in range(n_linear):
        w = refs[1 + 2 * l][...]                           # bf16
        b = refs[2 + 2 * l][...]                           # f32 (1, d_pad)
        y = jnp.dot(h, w, preferred_element_type=jnp.float32) + b   # f32 accum
        if l < n_linear - 1:
            # ReLU in f32; Dropout == identity (inference). Cast back to bf16 so
            # the next matmul keeps bf16 MXU operands.
            # TODO(synk): training-mode Dropout (p>0) not implemented.
            h = jnp.maximum(y, 0.0).astype(jnp.bfloat16)
        else:
            h = y                                          # head: no activation
    o_ref[...] = h.astype(o_ref.dtype)


# --------------------------- one-time param prep -------------------------------
def prepare_mlp_params(block_params, head_params):
    """Hoisted out of the forward: pad + cast parameters ONCE.

    block_params: list of (w, b) with w (d_prev, d), b (d,)   [hidden Linears]
    head_params:  (w, b) with w (d_last, d_out), b (d_out,)   [final Linear]

    Returns (prepared, dims):
      prepared: list of (w_pad bf16, b_pad f32); output dims padded to 128 lanes
                (v6e/v7x note: use 256 here only if the MLP becomes MXU-bound),
                layer-0 input dim left unpadded (x streams unpadded).
      dims:     tuple of real feature dims (d_in, *hidden, d_out)  -- static.
    """
    linears = list(block_params) + [head_params]
    dims = (int(linears[0][0].shape[0]),) + tuple(int(w.shape[1]) for w, _ in linears)
    prepared = []
    d_prev_pad = dims[0]                                   # real d_in, unpadded
    for (w, b) in linears:
        d_prev, d_next = int(w.shape[0]), int(w.shape[1])
        d_next_pad = _round_up(d_next, 128)                # lane-dense outputs
        w_pad = (jnp.zeros((d_prev_pad, d_next_pad), jnp.bfloat16)
                 .at[:d_prev, :d_next].set(jnp.asarray(w, jnp.bfloat16)))
        b_pad = (jnp.zeros((1, d_next_pad), jnp.float32)
                 .at[0, :d_next].set(jnp.asarray(b, jnp.float32)))
        prepared.append((w_pad, b_pad))
        d_prev_pad = d_next_pad
    return prepared, dims


# ------------------------------ fused forward -----------------------------------
def mlp_forward_pallas(x, prepared, dims, *, tm: int = 512,
                       out_dtype=jnp.float32):
    """Fused MLP forward. `prepared`/`dims` come from prepare_mlp_params.
    `dims`, `tm`, `out_dtype` must be static under jit."""
    B, d_in = x.shape
    assert d_in == dims[0], "x feature dim must match prepared params"
    n_linear = len(prepared)
    d_out = dims[-1]
    d_out_pad = int(prepared[-1][0].shape[1])
    dims_pad = [d_in] + [int(w.shape[1]) for (w, _) in prepared]

    # --- batch tiling: large tiles; >= 2 evenly-split grid steps when the batch
    # allows, so v7x's 2 TensorCores both get work (harmless on v5e/v6e). -------
    n_steps = max(1, pl.cdiv(B, tm))
    if n_steps == 1 and B >= 16:
        n_steps = 2
    TM = _round_up(pl.cdiv(B, n_steps), 8)
    B_pad = n_steps * TM

    # --- x: bf16, real feature width; pad only batch rows when needed ----------
    x_bf16 = x.astype(jnp.bfloat16)
    if B_pad != B:
        x_bf16 = jnp.zeros((B_pad, d_in), jnp.bfloat16).at[:B, :].set(x_bf16)

    args = [x_bf16]
    in_specs = [pl.BlockSpec((TM, d_in), lambda i: (i, 0))]
    for (w_pad, b_pad) in prepared:
        args += [w_pad, b_pad]
        # Constant block index -> fetched once, VMEM-resident across grid steps;
        # single-buffered (second pipeline buffer would be pure VMEM waste).
        in_specs += [
            pl.BlockSpec(w_pad.shape, lambda i: (0, 0),
                         pipeline_mode=pl.Buffered(1)),
            pl.BlockSpec(b_pad.shape, lambda i: (0, 0),
                         pipeline_mode=pl.Buffered(1)),
        ]

    out_itemsize = jnp.dtype(out_dtype).itemsize

    # --- explicit VMEM budget (v5e default scoped limit is only 16 MiB) --------
    param_vmem = sum(int(w.size) * 2 + int(b.size) * 4 for (w, b) in prepared)
    io_vmem = 2 * TM * d_in * 2 + 2 * TM * d_out_pad * out_itemsize
    act_vmem = 3 * TM * max(dims_pad) * 4                  # f32 working copies
    vmem_limit = 2 * param_vmem + io_vmem + act_vmem + (4 << 20)   # headroom
    vmem_limit = int(max(16 << 20, min(vmem_limit, 100 << 20)))

    # --- scheduler hint: real (unpadded) flops, actually-DMA'd bytes -----------
    flops = sum(2 * B * dims[l] * dims[l + 1] for l in range(n_linear))
    bytes_accessed = int(B_pad * d_in * 2 + param_vmem
                         + B_pad * d_out_pad * out_itemsize)

    kernel = functools.partial(_mlp_fused_kernel, n_linear=n_linear)
    out_pad = pl.pallas_call(
        kernel,
        out_shape=jax.ShapeDtypeStruct((B_pad, d_out_pad), out_dtype),
        grid=(n_steps,),
        in_specs=in_specs,
        out_specs=pl.BlockSpec((TM, d_out_pad), lambda i: (i, 0)),
        compiler_params=pltpu.CompilerParams(
            dimension_semantics=("parallel",),
            vmem_limit_bytes=vmem_limit),
        cost_estimate=pl.CostEstimate(
            flops=flops, transcendentals=0, bytes_accessed=bytes_accessed),
    )(*args)

    # Under jit this slice fuses with its consumer (no separate HBM pass).
    return out_pad[:B, :d_out]


# ------------------------------ params init ------------------------------------
def init_mlp_params(key, d_in, d_layers, d_out):
    """Mimics torch.nn.Linear default init (uniform +-1/sqrt(fan_in)).
    Weights stored transposed as (d_in, d_out), f32."""
    params = []
    dims = [d_in] + list(d_layers)
    n_linear = len(d_layers) + 1
    keys = jax.random.split(key, 2 * n_linear)
    for i, d in enumerate(d_layers):
        fan_in = dims[i]
        bound = 1.0 / (fan_in ** 0.5)
        w = jax.random.uniform(keys[2 * i], (fan_in, d), jnp.float32, -bound, bound)
        b = jax.random.uniform(keys[2 * i + 1], (d,), jnp.float32, -bound, bound)
        params.append((w, b))
    fan_in = d_layers[-1] if d_layers else d_in
    bound = 1.0 / (fan_in ** 0.5)
    w = jax.random.uniform(keys[-2], (fan_in, d_out), jnp.float32, -bound, bound)
    b = jax.random.uniform(keys[-1], (d_out,), jnp.float32, -bound, bound)
    return params, (w, b)


# ------------------------------- references -------------------------------------
def mlp_reference_bf16(x, block_params, head_params):
    """Reference matching the kernel's bf16-operand / f32-accumulate math."""
    h = x.astype(jnp.float32)
    linears = list(block_params) + [head_params]
    for l, (w, b) in enumerate(linears):
        y = jnp.dot(h.astype(jnp.bfloat16), w.astype(jnp.bfloat16),
                    preferred_element_type=jnp.float32) + b
        h = jnp.maximum(y, 0.0) if l < len(linears) - 1 else y
    return h


def mlp_reference_f32(x, block_params, head_params):
    h = x.astype(jnp.float32)
    for w, b in block_params:
        h = jnp.maximum(h @ w + b, 0.0)
    w, b = head_params
    return h @ w + b


# --------------------------------- demo -----------------------------------------
if __name__ == "__main__":
    key = jax.random.PRNGKey(0)
    k_x, k_x2, k_p = jax.random.split(key, 3)

    # Shapes consistent with MLP.make_baseline(d_in=16, [32, 32], 0.1, d_out=4)
    d_in, d_layers, d_out = 16, [32, 32], 4
    block_params, head_params = init_mlp_params(k_p, d_in, d_layers, d_out)

    # One-time parameter prep (pad + bf16 cast hoisted out of the forward).
    prepared, dims = prepare_mlp_params(block_params, head_params)
    fwd = jax.jit(mlp_forward_pallas, static_argnames=("dims", "tm", "out_dtype"))

    # Small batch (single grid step).
    x_small = jax.random.normal(k_x, (8, d_in), jnp.float32)
    out_small = jax.block_until_ready(fwd(x_small, prepared, dims=dims))
    assert out_small.shape == (8, d_out)
    ref_bf16 = mlp_reference_bf16(x_small, block_params, head_params)
    ref_f32 = mlp_reference_f32(x_small, block_params, head_params)
    assert jnp.allclose(out_small, ref_bf16, atol=1e-3, rtol=1e-3)
    assert jnp.allclose(out_small, ref_f32, atol=5e-2, rtol=5e-2)

    # Larger, non-multiple batch: exercises row padding + 2-step parallel grid.
    x_big = jax.random.normal(k_x2, (300, d_in), jnp.float32)
    out_big = jax.block_until_ready(fwd(x_big, prepared, dims=dims))
    assert out_big.shape == (300, d_out)
    ref_big = mlp_reference_bf16(x_big, block_params, head_params)
    assert jnp.allclose(out_big, ref_big, atol=1e-3, rtol=1e-3)

    print("KERNEL_OK")
</pallas_src>

<mosaic_0001>
module attributes {stable_mosaic.version = 11 : i64} {
  func.func @_mlp_fused_kernel(%arg0: i32, %arg1: memref<8x16xbf16, #tpu.memory_space<vmem>>, %arg2: memref<16x128xbf16, #tpu.memory_space<vmem>>, %arg3: memref<1x128xf32, #tpu.memory_space<vmem>>, %arg4: memref<128x128xbf16, #tpu.memory_space<vmem>>, %arg5: memref<1x128xf32, #tpu.memory_space<vmem>>, %arg6: memref<128x128xbf16, #tpu.memory_space<vmem>>, %arg7: memref<1x128xf32, #tpu.memory_space<vmem>>, %arg8: memref<8x128xf32, #tpu.memory_space<vmem>>) attributes {dimension_semantics = [#tpu.dimension_semantics<parallel>], iteration_bounds = array<i64: 1>, scalar_prefetch = 0 : i64, scratch_operands = 0 : i64, tpu.core_type = #tpu.core_type<tc>, window_params = [{transform_indices = @transform_0, window_bounds = array<i64: 8, 16>}, {pipeline_mode = #tpu.pipeline_mode<synchronous>, transform_indices = @transform_1, window_bounds = array<i64: 16, 128>}, {pipeline_mode = #tpu.pipeline_mode<synchronous>, transform_indices = @transform_2, window_bounds = array<i64: 1, 128>}, {pipeline_mode = #tpu.pipeline_mode<synchronous>, transform_indices = @transform_3, window_bounds = array<i64: 128, 128>}, {pipeline_mode = #tpu.pipeline_mode<synchronous>, transform_indices = @transform_4, window_bounds = array<i64: 1, 128>}, {pipeline_mode = #tpu.pipeline_mode<synchronous>, transform_indices = @transform_5, window_bounds = array<i64: 128, 128>}, {pipeline_mode = #tpu.pipeline_mode<synchronous>, transform_indices = @transform_6, window_bounds = array<i64: 1, 128>}, {transform_indices = @transform_7, window_bounds = array<i64: 8, 128>}]} {
    %c0 = arith.constant 0 : index
    %c0_0 = arith.constant 0 : index
    %0 = vector.load %arg1[%c0, %c0_0] : memref<8x16xbf16, #tpu.memory_space<vmem>>, vector<8x16xbf16>
    %c0_1 = arith.constant 0 : index
    %c0_2 = arith.constant 0 : index
    %1 = vector.load %arg2[%c0_1, %c0_2] : memref<16x128xbf16, #tpu.memory_space<vmem>>, vector<16x128xbf16>
    %c0_3 = arith.constant 0 : index
    %c0_4 = arith.constant 0 : index
    %2 = vector.load %arg3[%c0_3, %c0_4] : memref<1x128xf32, #tpu.memory_space<vmem>>, vector<1x128xf32>
    %cst = arith.constant dense<0.000000e+00> : vector<8x128xf32>
    %3 = tpu.matmul %0, %1, %cst {dimension_numbers = #tpu.dot_dimension_numbers<[1], [0], [0], [1], [0, 0, 1, 1], [], []>} : vector<8x16xbf16>, vector<16x128xbf16>, vector<8x128xf32> -> vector<8x128xf32>
    %4 = vector.broadcast %2 : vector<1x128xf32> to vector<8x128xf32>
    %5 = arith.addf %3, %4 : vector<8x128xf32>
    %cst_5 = arith.constant 0.000000e+00 : f32
    %6 = vector.broadcast %cst_5 : f32 to vector<8x128xf32>
    %7 = arith.maximumf %5, %6 : vector<8x128xf32>
    %8 = arith.truncf %7 : vector<8x128xf32> to vector<8x128xbf16>
    %c0_6 = arith.constant 0 : index
    %c0_7 = arith.constant 0 : index
    %9 = vector.load %arg4[%c0_6, %c0_7] : memref<128x128xbf16, #tpu.memory_space<vmem>>, vector<128x128xbf16>
    %c0_8 = arith.constant 0 : index
    %c0_9 = arith.constant 0 : index
    %10 = vector.load %arg5[%c0_8, %c0_9] : memref<1x128xf32, #tpu.memory_space<vmem>>, vector<1x128xf32>
    %cst_10 = arith.constant dense<0.000000e+00> : vector<8x128xf32>
    %11 = tpu.matmul %8, %9, %cst_10 {dimension_numbers = #tpu.dot_dimension_numbers<[1], [0], [0], [1], [0, 0, 1, 1], [], []>} : vector<8x128xbf16>, vector<128x128xbf16>, vector<8x128xf32> -> vector<8x128xf32>
    %12 = vector.broadcast %10 : vector<1x128xf32> to vector<8x128xf32>
    %13 = arith.addf %11, %12 : vector<8x128xf32>
    %cst_11 = arith.constant 0.000000e+00 : f32
    %14 = vector.broadcast %cst_11 : f32 to vector<8x128xf32>
    %15 = arith.maximumf %13, %14 : vector<8x128xf32>
    %16 = arith.truncf %15 : vector<8x128xf32> to vector<8x128xbf16>
    %c0_12 = arith.constant 0 : index
    %c0_13 = arith.constant 0 : index
    %17 = vector.load %arg6[%c0_12, %c0_13] : memref<128x128xbf16, #tpu.memory_space<vmem>>, vector<128x128xbf16>
    %c0_14 = arith.constant 0 : index
    %c0_15 = arith.constant 0 : index
    %18 = vector.load %arg7[%c0_14, %c0_15] : memref<1x128xf32, #tpu.memory_space<vmem>>, vector<1x128xf32>
    %cst_16 = arith.constant dense<0.000000e+00> : vector<8x128xf32>
    %19 = tpu.matmul %16, %17, %cst_16 {dimension_numbers = #tpu.dot_dimension_numbers<[1], [0], [0], [1], [0, 0, 1, 1], [], []>} : vector<8x128xbf16>, vector<128x128xbf16>, vector<8x128xf32> -> vector<8x128xf32>
    %20 = vector.broadcast %18 : vector<1x128xf32> to vector<8x128xf32>
    %21 = arith.addf %19, %20 : vector<8x128xf32>
    %c0_17 = arith.constant 0 : index
    %c0_18 = arith.constant 0 : index
    %22 = vector.load %arg8[%c0_17, %c0_18] : memref<8x128xf32, #tpu.memory_space<vmem>>, vector<8x128xf32>
    tpu.vector_store %arg8[%c0_17, %c0_18], %21 {strides = array<i32>} : memref<8x128xf32, #tpu.memory_space<vmem>>, vector<8x128xf32>,
    return
  }
  func.func @transform_0(%arg0: i32) -> (i32, i32) {
    %c0_i32 = arith.constant 0 : i32
    %c0_i32_0 = arith.constant 0 : i32
    return %arg0, %c0_i32 : i32, i32
  }
  func.func @transform_1(%arg0: i32) -> (i32, i32) {
    %c0_i32 = arith.constant 0 : i32
    %c0_i32_0 = arith.constant 0 : i32
    %c0_i32_1 = arith.constant 0 : i32
    return %c0_i32, %c0_i32_0 : i32, i32
  }
  func.func @transform_2(%arg0: i32) -> (i32, i32) {
    %c0_i32 = arith.constant 0 : i32
    %c0_i32_0 = arith.constant 0 : i32
    %c0_i32_1 = arith.constant 0 : i32
    return %c0_i32, %c0_i32_0 : i32, i32
  }
  func.func @transform_3(%arg0: i32) -> (i32, i32) {
    %c0_i32 = arith.constant 0 : i32
    %c0_i32_0 = arith.constant 0 : i32
    %c0_i32_1 = arith.constant 0 : i32
    return %c0_i32, %c0_i32_0 : i32, i32
  }
  func.func @transform_4(%arg0: i32) -> (i32, i32) {
    %c0_i32 = arith.constant 0 : i32
    %c0_i32_0 = arith.constant 0 : i32
    %c0_i32_1 = arith.constant 0 : i32
    return %c0_i32, %c0_i32_0 : i32, i32
  }
  func.func @transform_5(%arg0: i32) -> (i32, i32) {
    %c0_i32 = arith.constant 0 : i32
    %c0_i32_0 = arith.constant 0 : i32
    %c0_i32_1 = arith.constant 0 : i32
    return %c0_i32, %c0_i32_0 : i32, i32
  }
  func.func @transform_6(%arg0: i32) -> (i32, i32) {
    %c0_i32 = arith.constant 0 : i32
    %c0_i32_0 = arith.constant 0 : i32
    %c0_i32_1 = arith.constant 0 : i32
    return %c0_i32, %c0_i32_0 : i32, i32
  }
  func.func @transform_7(%arg0: i32) -> (i32, i32) {
    %c0_i32 = arith.constant 0 : i32
    %c0_i32_0 = arith.constant 0 : i32
    return %arg0, %c0_i32 : i32, i32
  }
}

</mosaic_0001>

<llo_original>
// kernel: mlp_forward_pallas.1
$region0: #{mlp_forward_pallas.1}
  #allocation0 [shape = 'u32[]', space=smem, size = 0x4, offset = 0x4, fixed_abs, tag = 'smem constant byte address 0x4 - core index']
  #allocation1 [shape = 'u32[144,128]{1,0:T(1,128)}', space=vmem, size = 0x12000, scoped, tag = 'internal scratch']
  %s0 = inlined_call_operand.vmem [shape: bf16[8,16], index: 0, kind: input, shape index: {}]
  %s1 = inlined_call_operand.vmem [shape: bf16[16,128], index: 1, kind: input, shape index: {}]
  %s2 = inlined_call_operand.vmem [shape: f32[1,128], index: 2, kind: input, shape index: {}]
  %s3 = inlined_call_operand.hbm [shape: bf16[128,128], index: 3, kind: input, shape index: {}]
  %s4 = inlined_call_operand.vmem [shape: f32[1,128], index: 4, kind: input, shape index: {}]
  %s5 = inlined_call_operand.hbm [shape: bf16[128,128], index: 5, kind: input, shape index: {}]
  %s6 = inlined_call_operand.vmem [shape: f32[1,128], index: 6, kind: input, shape index: {}]
  %s7 = inlined_call_operand.vmem [shape: f32[8,128], index: 7, kind: output, shape index: {}]
  %s8 = sld [smem:[#allocation0]]
  $region46: #{mlp_forward_pallas.1} parent=0
    _
  %s10 = ssub.s32 1, %s8
  %s11 = scalar_select 0, %s10, %s8
  $region1: #{mlp_forward_pallas.1} parent=0
    #allocation2 [shape = 'u8[32768]{0}', space=vmem, size = 0x8000, scoped, tag = 'input window, operand 3, single buffered']
    #allocation3 [shape = 's32[1]{0}', space=sflag, size = 0x4, scoped, tag = 'scoped memory for mlp_forward_pallas.1']
    #allocation4 [shape = 'u8[32768]{0}', space=vmem, size = 0x8000, scoped, tag = 'input window, operand 5, single buffered']
    #allocation5 [shape = 's32[1]{0}', space=sflag, size = 0x4, scoped, tag = 'scoped memory for mlp_forward_pallas.1']
    %12 = vsyncpa [#allocation3], 0
    %13 = vsyncpa [#allocation5], 0
    // Predicated region
    $region2: #{mlp_forward_pallas.1} parent=1 // pred_check
      _
    $region3: #{mlp_forward_pallas.1} parent=1 // pred_check_branch
      %15 = sbr.rel (0) target = $region5
    $region4: #{mlp_forward_pallas.1} parent=1 // pred_region
      _
    $region5: #{mlp_forward_pallas.1} parent=1 // pred_fallthru
      _
    // Predicated region
    $region6: #{mlp_forward_pallas.1} parent=1 // pred_check
      _
    $region7: #{mlp_forward_pallas.1} parent=1 // pred_check_branch
      %17 = sbr.rel (0) target = $region9
    $region8: #{mlp_forward_pallas.1} parent=1 // pred_region
      _
    $region9: #{mlp_forward_pallas.1} parent=1 // pred_fallthru
      _
    // Predicated region
    $region10: #{mlp_forward_pallas.1} parent=1 // pred_check
      _
    $region11: #{mlp_forward_pallas.1} parent=1 // pred_check_branch
      %19 = sbr.rel (0) target = $region13
    $region12: #{mlp_forward_pallas.1} parent=1 // pred_region
      _
    $region13: #{mlp_forward_pallas.1} parent=1 // pred_fallthru
      _
    // Predicated region
    $region14: #{mlp_forward_pallas.1} parent=1 // pred_check
      _
    $region15: #{mlp_forward_pallas.1} parent=1 // pred_check_branch
      %21 = sbr.rel (0) target = $region17
    $region16: #{mlp_forward_pallas.1} parent=1 // pred_region
      %s23 = ssub.s32 1024, 1024
      %24 = vsyncadd [#allocation3], %s23
      %s25 = sshll.u32 [#allocation2], 4
      %s26 = int_to_ptr.vmem [resolvable:$true] %s25
      %31 = dma.hbm_to_vmem [thread:$0]  %s3, 1024, %s26, [#allocation3], 64, 64, 4
    $region17: #{mlp_forward_pallas.1} parent=1 // pred_fallthru
      _
    // Predicated region
    $region18: #{mlp_forward_pallas.1} parent=1 // pred_check
      _
    $region19: #{mlp_forward_pallas.1} parent=1 // pred_check_branch
      %33 = sbr.rel (0) target = $region21
    $region20: #{mlp_forward_pallas.1} parent=1 // pred_region
      _
    $region21: #{mlp_forward_pallas.1} parent=1 // pred_fallthru
      _
    // Predicated region
    $region22: #{mlp_forward_pallas.1} parent=1 // pred_check
      _
    $region23: #{mlp_forward_pallas.1} parent=1 // pred_check_branch
      %35 = sbr.rel (0) target = $region25
    $region24: #{mlp_forward_pallas.1} parent=1 // pred_region
      %s37 = ssub.s32 1024, 1024
      %38 = vsyncadd [#allocation5], %s37
      %s39 = sshll.u32 [#allocation4], 4
      %s40 = int_to_ptr.vmem [resolvable:$true] %s39
      %45 = dma.hbm_to_vmem [thread:$0]  %s5, 1024, %s40, [#allocation5], 64, 64, 4
    $region25: #{mlp_forward_pallas.1} parent=1 // pred_fallthru
      _
    // Predicated region
    $region26: #{mlp_forward_pallas.1} parent=1 // pred_check
      _
    $region27: #{mlp_forward_pallas.1} parent=1 // pred_check_branch
      %47 = sbr.rel (0) target = $region29
    $region28: #{mlp_forward_pallas.1} parent=1 // pred_region
      _
    $region29: #{mlp_forward_pallas.1} parent=1 // pred_fallthru
      _
    // Predicated region
    $region30: #{mlp_forward_pallas.1} parent=1 // pred_check
      _
    $region31: #{mlp_forward_pallas.1} parent=1 // pred_check_branch
      %49 = sbr.rel (0) target = $region33
    $region32: #{mlp_forward_pallas.1} parent=1 // pred_region
      %50 = dma.done [#allocation3], 1024
    $region33: #{mlp_forward_pallas.1} parent=1 // pred_fallthru
      _
    // Predicated region
    $region34: #{mlp_forward_pallas.1} parent=1 // pred_check
      _
    $region35: #{mlp_forward_pallas.1} parent=1 // pred_check_branch
      %52 = sbr.rel (0) target = $region37
    $region36: #{mlp_forward_pallas.1} parent=1 // pred_region
      %53 = dma.done [#allocation5], 1024
    $region37: #{mlp_forward_pallas.1} parent=1 // pred_fallthru
      _
    %v55 = vld [vmem:[%s0] sm:$0xf]
    %v56 = vld [vmem:[%s1] sm:$0xf]
    %v57 = vld [vmem:[%s1 + $0x4] sm:$0xf]
    %v58 = vld [vmem:[%s2] sm:$0x1]
    %v60 = vlaneseq
    %v61 = vshrl.u32 %v60, 7
    %v62 = vsub.s32 0, %v61
    %v63 = vrot.slane %v58, %v62
    %v67 = vunpack.c.l.b16 %v56
    %v68 = vunpack.c.l.b16 %v57
    %v69 = vpack.c.b16 %v68, %v67
    %vm71 = vcmask 130048
    %v73 = vsel %vm71, %v55, 0
    %75 = vmatprep.subr.bf16.mxu0 0
    %76 = vmatpush1.bf16.msra.mxu0 %v69
    %77 = vmatprep.subr.bf16.mxu0 0
    %78 = vmatpush1.bf16.msra.mxu0 0
    %79 = vmatprep.subr.bf16.mxu0 0
    %80 = vmatpush1.bf16.msra.mxu0 0
    %81 = vmatprep.subr.bf16.mxu0 0
    %82 = vmatpush1.bf16.msra.mxu0 0
    %83 = vmatprep.subr.bf16.mxu0 0
    %84 = vmatpush1.bf16.msra.mxu0 0
    %85 = vmatprep.subr.bf16.mxu0 0
    %86 = vmatpush1.bf16.msra.mxu0 0
    %87 = vmatprep.subr.bf16.mxu0 0
    %88 = vmatpush1.bf16.msra.mxu0 0
    %89 = vmatprep.subr.bf16.mxu0 0
    %90 = vmatpush1.bf16.msra.mxu0 0
    %91 = vmatprep.subr.bf16.mxu0 0
    %92 = vmatpush1.bf16.msra.mxu0 0
    %93 = vmatprep.subr.bf16.mxu0 0
    %94 = vmatpush1.bf16.msra.mxu0 0
    %95 = vmatprep.subr.bf16.mxu0 0
    %96 = vmatpush1.bf16.msra.mxu0 0
    %97 = vmatprep.subr.bf16.mxu0 0
    %98 = vmatpush1.bf16.msra.mxu0 0
    %99 = vmatprep.subr.bf16.mxu0 0
    %100 = vmatpush1.bf16.msra.mxu0 0
    %101 = vmatprep.subr.bf16.mxu0 0
    %102 = vmatpush1.bf16.msra.mxu0 0
    %103 = vmatprep.subr.bf16.mxu0 0
    %104 = vmatpush1.bf16.msra.mxu0 0
    %105 = vmatprep.subr.bf16.mxu0 0
    %106 = vmatpush1.bf16.msra.mxu0 0
    %107 = vmatprep.mubr.bf16.mxu0 0
    %108 = vmatmul.mubr.bf16.gmra.mrb[0].mxu0 %v73
    %v109 = vpop.f32.mrb[0].mxu0
    %v110 = vadd.f32 %v63, %v109
    %v111 = vpop.f32.mrb[0].mxu0
    %v112 = vpop.f32.mrb[0].mxu0
    %v113 = vpop.f32.mrb[0].mxu0
    %114 = vdwg.mxu0
    %v115 = vmax.f32 %v110, 0.0
    %v116 = vpack.c.bf16 %v115, %v115
    %v117 = vld [vmem:[#allocation2] sm:$0xf]
    %v118 = vld [vmem:[#allocation2 + $0x4] sm:$0xf]
    %v119 = vld [vmem:[#allocation2 + $0x8] sm:$0xf]
    %v120 = vld [vmem:[#allocation2 + $0xc] sm:$0xf]
    %v121 = vld [vmem:[#allocation2 + $0x10] sm:$0xf]
    %v122 = vld [vmem:[#allocation2 + $0x14] sm:$0xf]
    %v123 = vld [vmem:[#allocation2 + $0x18] sm:$0xf]
    %v124 = vld [vmem:[#allocation2 + $0x1c] sm:$0xf]
    %v125 = vld [vmem:[#allocation2 + $0x20] sm:$0xf]
    %v126 = vld [vmem:[#allocation2 + $0x24] sm:$0xf]
    %v127 = vld [vmem:[#allocation2 + $0x28] sm:$0xf]
    %v128 = vld [vmem:[#allocation2 + $0x2c] sm:$0xf]
    %v129 = vld [vmem:[#allocation2 + $0x30] sm:$0xf]
    %v130 = vld [vmem:[#allocation2 + $0x34] sm:$0xf]
    %v131 = vld [vmem:[#allocation2 + $0x38] sm:$0xf]
    %v132 = vld [vmem:[#allocation2 + $0x3c] sm:$0xf]
    %v133 = vld [vmem:[%s4] sm:$0x1]
    %v135 = vlaneseq
    %v136 = vshrl.u32 %v135, 7
    %v137 = vsub.s32 0, %v136
    %v138 = vrot.slane %v133, %v137
    %v156 = vunpack.c.l.b16 %v117
    %v157 = vunpack.c.l.b16 %v118
    %v158 = vunpack.c.l.b16 %v119
    %v159 = vunpack.c.l.b16 %v120
    %v160 = vunpack.c.l.b16 %v121
    %v161 = vunpack.c.l.b16 %v122
    %v162 = vunpack.c.l.b16 %v123
    %v163 = vunpack.c.l.b16 %v124
    %v164 = vunpack.c.l.b16 %v125
    %v165 = vunpack.c.l.b16 %v126
    %v166 = vunpack.c.l.b16 %v127
    %v167 = vunpack.c.l.b16 %v128
    %v168 = vunpack.c.l.b16 %v129
    %v169 = vunpack.c.l.b16 %v130
    %v170 = vunpack.c.l.b16 %v131
    %v171 = vunpack.c.l.b16 %v132
    %v172 = vpack.c.b16 %v157, %v156
    %v173 = vpack.c.b16 %v159, %v158
    %v174 = vpack.c.b16 %v161, %v160
    %v175 = vpack.c.b16 %v163, %v162
    %v176 = vpack.c.b16 %v165, %v164
    %v177 = vpack.c.b16 %v167, %v166
    %v178 = vpack.c.b16 %v169, %v168
    %v179 = vpack.c.b16 %v171, %v170
    %188 = vmatprep.subr.bf16.mxu0 0
    %189 = vmatpush1.bf16.msra.mxu0 %v172
    %190 = vmatprep.subr.bf16.mxu0 0
    %191 = vmatpush1.bf16.msra.mxu0 %v173
    %192 = vmatprep.subr.bf16.mxu0 0
    %193 = vmatpush1.bf16.msra.mxu0 %v174
    %194 = vmatprep.subr.bf16.mxu0 0
    %195 = vmatpush1.bf16.msra.mxu0 %v175
    %196 = vmatprep.subr.bf16.mxu0 0
    %197 = vmatpush1.bf16.msra.mxu0 %v176
    %198 = vmatprep.subr.bf16.mxu0 0
    %199 = vmatpush1.bf16.msra.mxu0 %v177
    %200 = vmatprep.subr.bf16.mxu0 0
    %201 = vmatpush1.bf16.msra.mxu0 %v178
    %202 = vmatprep.subr.bf16.mxu0 0
    %203 = vmatpush1.bf16.msra.mxu0 %v179
    %204 = vmatprep.subr.bf16.mxu0 0
    %205 = vmatpush1.bf16.msra.mxu0 0
    %206 = vmatprep.subr.bf16.mxu0 0
    %207 = vmatpush1.bf16.msra.mxu0 0
    %208 = vmatprep.subr.bf16.mxu0 0
    %209 = vmatpush1.bf16.msra.mxu0 0
    %210 = vmatprep.subr.bf16.mxu0 0
    %211 = vmatpush1.bf16.msra.mxu0 0
    %212 = vmatprep.subr.bf16.mxu0 0
    %213 = vmatpush1.bf16.msra.mxu0 0
    %214 = vmatprep.subr.bf16.mxu0 0
    %215 = vmatpush1.bf16.msra.mxu0 0
    %216 = vmatprep.subr.bf16.mxu0 0
    %217 = vmatpush1.bf16.msra.mxu0 0
    %218 = vmatprep.subr.bf16.mxu0 0
    %219 = vmatpush1.bf16.msra.mxu0 0
    %220 = vmatprep.mubr.bf16.mxu0 0
    %221 = vmatmul.mubr.bf16.gmra.mrb[0].mxu0 %v116
    %v222 = vpop.f32.mrb[0].mxu0
    %v223 = vadd.f32 %v138, %v222
    %v224 = vpop.f32.mrb[0].mxu0
    %v225 = vpop.f32.mrb[0].mxu0
    %v226 = vpop.f32.mrb[0].mxu0
    %227 = vdwg.mxu0
    %v228 = vmax.f32 %v223, 0.0
    %v229 = vpack.c.bf16 %v228, %v228
    %v230 = vld [vmem:[#allocation4] sm:$0xf]
    %v231 = vld [vmem:[#allocation4 + $0x4] sm:$0xf]
    %v232 = vld [vmem:[#allocation4 + $0x8] sm:$0xf]
    %v233 = vld [vmem:[#allocation4 + $0xc] sm:$0xf]
    %v234 = vld [vmem:[#allocation4 + $0x10] sm:$0xf]
    %v235 = vld [vmem:[#allocation4 + $0x14] sm:$0xf]
    %v236 = vld [vmem:[#allocation4 + $0x18] sm:$0xf]
    %v237 = vld [vmem:[#allocation4 + $0x1c] sm:$0xf]
    %v238 = vld [vmem:[#allocation4 + $0x20] sm:$0xf]
    %v239 = vld [vmem:[#allocation4 + $0x24] sm:$0xf]
    %v240 = vld [vmem:[#allocation4 + $0x28] sm:$0xf]
    %v241 = vld [vmem:[#allocation4 + $0x2c] sm:$0xf]
    %v242 = vld [vmem:[#allocation4 + $0x30] sm:$0xf]
    %v243 = vld [vmem:[#allocation4 + $0x34] sm:$0xf]
    %v244 = vld [vmem:[#allocation4 + $0x38] sm:$0xf]
    %v245 = vld [vmem:[#allocation4 + $0x3c] sm:$0xf]
    %v246 = vld [vmem:[%s6] sm:$0x1]
    %v248 = vlaneseq
    %v249 = vshrl.u32 %v248, 7
    %v250 = vsub.s32 0, %v249
    %v251 = vrot.slane %v246, %v250
    %v269 = vunpack.c.l.b16 %v230
    %v270 = vunpack.c.l.b16 %v231
    %v271 = vunpack.c.l.b16 %v232
    %v272 = vunpack.c.l.b16 %v233
    %v273 = vunpack.c.l.b16 %v234
    %v274 = vunpack.c.l.b16 %v235
    %v275 = vunpack.c.l.b16 %v236
    %v276 = vunpack.c.l.b16 %v237
    %v277 = vunpack.c.l.b16 %v238
    %v278 = vunpack.c.l.b16 %v239
    %v279 = vunpack.c.l.b16 %v240
    %v280 = vunpack.c.l.b16 %v241
    %v281 = vunpack.c.l.b16 %v242
    %v282 = vunpack.c.l.b16 %v243
    %v283 = vunpack.c.l.b16 %v244
    %v284 = vunpack.c.l.b16 %v245
    %v285 = vpack.c.b16 %v270, %v269
    %v286 = vpack.c.b16 %v272, %v271
    %v287 = vpack.c.b16 %v274, %v273
    %v288 = vpack.c.b16 %v276, %v275
    %v289 = vpack.c.b16 %v278, %v277
    %v290 = vpack.c.b16 %v280, %v279
    %v291 = vpack.c.b16 %v282, %v281
    %v292 = vpack.c.b16 %v284, %v283
    %301 = vmatprep.subr.bf16.mxu0 0
    %302 = vmatpush1.bf16.msra.mxu0 %v285
    %303 = vmatprep.subr.bf16.mxu0 0
    %304 = vmatpush1.bf16.msra.mxu0 %v286
    %305 = vmatprep.subr.bf16.mxu0 0
    %306 = vmatpush1.bf16.msra.mxu0 %v287
    %307 = vmatprep.subr.bf16.mxu0 0
    %308 = vmatpush1.bf16.msra.mxu0 %v288
    %309 = vmatprep.subr.bf16.mxu0 0
    %310 = vmatpush1.bf16.msra.mxu0 %v289
    %311 = vmatprep.subr.bf16.mxu0 0
    %312 = vmatpush1.bf16.msra.mxu0 %v290
    %313 = vmatprep.subr.bf16.mxu0 0
    %314 = vmatpush1.bf16.msra.mxu0 %v291
    %315 = vmatprep.subr.bf16.mxu0 0
    %316 = vmatpush1.bf16.msra.mxu0 %v292
    %317 = vmatprep.subr.bf16.mxu0 0
    %318 = vmatpush1.bf16.msra.mxu0 0
    %319 = vmatprep.subr.bf16.mxu0 0
    %320 = vmatpush1.bf16.msra.mxu0 0
    %321 = vmatprep.subr.bf16.mxu0 0
    %322 = vmatpush1.bf16.msra.mxu0 0
    %323 = vmatprep.subr.bf16.mxu0 0
    %324 = vmatpush1.bf16.msra.mxu0 0
    %325 = vmatprep.subr.bf16.mxu0 0
    %326 = vmatpush1.bf16.msra.mxu0 0
    %327 = vmatprep.subr.bf16.mxu0 0
    %328 = vmatpush1.bf16.msra.mxu0 0
    %329 = vmatprep.subr.bf16.mxu0 0
    %330 = vmatpush1.bf16.msra.mxu0 0
    %331 = vmatprep.subr.bf16.mxu0 0
    %332 = vmatpush1.bf16.msra.mxu0 0
    %333 = vmatprep.mubr.bf16.mxu0 0
    %334 = vmatmul.mubr.bf16.gmra.mrb[0].mxu0 %v229
    %v335 = vpop.f32.mrb[0].mxu0
    %v336 = vadd.f32 %v251, %v335
    %v337 = vpop.f32.mrb[0].mxu0
    %v338 = vpop.f32.mrb[0].mxu0
    %v339 = vpop.f32.mrb[0].mxu0
    %340 = vdwg.mxu0
    %341 = vst [vmem:[%s7] sm:$0xff] %v336
    // Predicated region
    $region38: #{mlp_forward_pallas.1} parent=1 // pred_check
      _
    $region39: #{mlp_forward_pallas.1} parent=1 // pred_check_branch
      %343 = sbr.rel (0) target = $region41
    $region40: #{mlp_forward_pallas.1} parent=1 // pred_region
      _
    $region41: #{mlp_forward_pallas.1} parent=1 // pred_fallthru
      _
    // Predicated region
    $region42: #{mlp_forward_pallas.1} parent=1 // pred_check
      _
    $region43: #{mlp_forward_pallas.1} parent=1 // pred_check_branch
      %345 = sbr.rel (0) target = $region45
    $region44: #{mlp_forward_pallas.1} parent=1 // pred_region
      _
    $region45: #{mlp_forward_pallas.1} parent=1 // pred_fallthru
      _
    %346 = vsyncpa [#allocation3], 1
    %347 = vsyncpa [#allocation5], 1

</llo_original>
